<compile_context>
chip_gen: v5e
topology: v5e:2x2
jax: 0.10.0
libtpu: 0.0.40
codegen_flags: <defaults>
</compile_context>

<pallas_src>
import functools

import jax
import jax.numpy as jnp
from jax import lax
from jax.experimental import pallas as pl
from jax.experimental.pallas import tpu as pltpu


def _round_up(x, m):
    return ((x + m - 1) // m) * m


def _conv_kernel(x_ref, w_ref, b_ref, h_ref, o_ref, scr,
                 *, tl, tl2, xw, valid_last, n_t):
    """One (batch, length-tile) step of pad(1,1) + Conv1d(C, C, k=3, stride=2).

    x_ref : (1, C, XW)     raw input tile (length on lanes)
    w_ref : (C, 3C)        fused taps: w[co, k*C + ci] = weight[co, ci, k]
    b_ref : (C, 1)         bias
    h_ref : (1, n_t, C)    per-batch halo rows x[b, :, TL2*t - 1] (zeros at t=0)
    o_ref : (1, C, TL)     output tile
    scr   : (8 + TL2, C)   VMEM scratch: input transposed, length on sublanes
                           (x position i of this tile lives at scratch row 8+i,
                            the left halo lives at row 7)
    """
    t = pl.program_id(1)
    c = o_ref.shape[1]

    # Length-on-sublanes copy of the tile (single XLU transpose, aligned store).
    scr[8:8 + xw, :] = x_ref[0].T
    # Left halo: x[TL2*t - 1] (zero for the very first output of the sequence).
    scr[7:8, :] = h_ref[0, pl.ds(t, 1), :]

    # Only the last tile can be ragged: zero its out-of-bounds tail so garbage
    # from the partial input block never reaches a valid output column.
    if valid_last < tl2:
        @pl.when(t == n_t - 1)
        def _zero_tail():
            scr[8 + valid_last:8 + tl2, :] = jnp.zeros(
                (tl2 - valid_last, c), dtype=scr.dtype)

    # Stride-2 sublane loads give the three conv taps, (TL, C) each.
    t_left = scr[pl.ds(7, tl, stride=2), :]    # x[2j - 1]
    t_mid = scr[pl.ds(8, tl, stride=2), :]     # x[2j]
    t_right = scr[pl.ds(9, tl, stride=2), :]   # x[2j + 1]
    taps = jnp.concatenate([t_left, t_mid, t_right], axis=1)   # (TL, 3C)

    # Single fused MXU matmul (contraction over 3C); result is the lane-dense
    # (C, TL) output tile, no output transpose needed.
    y = lax.dot_general(w_ref[...], taps, (((1,), (1,)), ((), ())),
                        preferred_element_type=jnp.float32)
    o_ref[0] = (y + b_ref[...].astype(jnp.float32)).astype(o_ref.dtype)


def _pool_kernel(x_ref, o_ref, scr, *, tl, xw):
    """avg_pool1d(k=2, s=2): one (batch, length-tile) step.

    x_ref : (1, C, XW)  raw input tile
    o_ref : (1, C, TL)  output tile
    scr   : (>=XW, C)   VMEM scratch, input transposed (length on sublanes)
    """
    scr[0:xw, :] = x_ref[0].T
    ev = scr[pl.ds(0, tl, stride=2), :]        # x[2j]
    od = scr[pl.ds(1, tl, stride=2), :]        # x[2j + 1]
    o_ref[0] = ((ev + od) * 0.5).T.astype(o_ref.dtype)


def downsample1d(x, weight=None, bias=None, *, with_conv=True, tile_l=512):
    """Forward pass of Downsample1D.

    x      : (B, C, L) array (NCL).
    weight : (C, C, 3) Conv1d weight (with_conv=True).
    bias   : (C,)      Conv1d bias   (with_conv=True).
    tile_l : output-length tile (multiple of 128).  512 is v7x-safe; 1024-2048
             can be used on v5e/v6e (raise vmem_limit_bytes accordingly).
    """
    assert tile_l % 128 == 0 and tile_l >= 128
    B, C, L = x.shape
    dtype = x.dtype

    if with_conv:
        assert weight is not None and bias is not None
        Lout = (L - 1) // 2 + 1          # torch: pad (1,1), k=3, stride=2
    else:
        Lout = L // 2                    # avg_pool1d(k=2, s=2), floor

    # ---- output-length tiling (multiples of 128 whenever we tile) ----------
    if Lout <= 128:
        TL = Lout
    else:
        TL = min(tile_l, _round_up(Lout, 128))
        if B == 1:                       # >=2 grid steps so both v7x cores work
            TL = min(TL, 128 * pl.cdiv(Lout, 256))
        TL = max(TL, 128)
    n_t = pl.cdiv(Lout, TL)
    TL2 = 2 * TL
    # x block width: prefer TL2 (128-aligned, lane-dense DMA); fall back to the
    # full L only for tiny odd-length single-tile cases.
    XW = TL2 if (TL2 % 128 == 0 or TL2 == L) else L

    grid = (B, n_t)
    cparams = pltpu.CompilerParams(
        dimension_semantics=("parallel", "parallel"),
        vmem_limit_bytes=48 * 1024 * 1024)

    if with_conv:
        valid_last = L - TL2 * (n_t - 1)           # valid x positions, last tile

        # Fused taps: w_cat[co, k*C + ci] = weight[co, ci, k]  -> (C, 3C)
        w_cat = jnp.transpose(weight, (0, 2, 1)).reshape(C, 3 * C).astype(dtype)
        b_col = bias.reshape(C, 1).astype(dtype)

        # Batched left-halo rows: x[b, :, TL2*t - 1], zeros for t == 0.
        starts = TL2 * jnp.arange(n_t, dtype=jnp.int32) - 1
        halo = jnp.take(x, jnp.maximum(starts, 0), axis=2)          # (B, C, n_t)
        halo = jnp.where((starts >= 0)[None, None, :], halo, 0)
        halo = jnp.transpose(halo, (0, 2, 1))                       # (B, n_t, C)

        kernel = functools.partial(_conv_kernel, tl=TL, tl2=TL2, xw=XW,
                                   valid_last=valid_last, n_t=n_t)
        return pl.pallas_call(
            kernel,
            out_shape=jax.ShapeDtypeStruct((B, C, Lout), dtype),
            grid=grid,
            in_specs=[
                pl.BlockSpec((1, C, XW), lambda b, t: (b, 0, t)),    # x tile
                pl.BlockSpec((C, 3 * C), lambda b, t: (0, 0)),       # weights
                pl.BlockSpec((C, 1), lambda b, t: (0, 0)),           # bias
                pl.BlockSpec((1, n_t, C), lambda b, t: (b, 0, 0)),   # halo
            ],
            out_specs=pl.BlockSpec((1, C, TL), lambda b, t: (b, 0, t)),
            scratch_shapes=[pltpu.VMEM((8 + TL2, C), dtype)],
            compiler_params=cparams,
        )(x, w_cat, b_col, halo)

    else:
        kernel = functools.partial(_pool_kernel, tl=TL, xw=XW)
        sh = _round_up(max(XW, TL2), 8)
        return pl.pallas_call(
            kernel,
            out_shape=jax.ShapeDtypeStruct((B, C, Lout), dtype),
            grid=grid,
            in_specs=[pl.BlockSpec((1, C, XW), lambda b, t: (b, 0, t))],
            out_specs=pl.BlockSpec((1, C, TL), lambda b, t: (b, 0, t)),
            scratch_shapes=[pltpu.VMEM((sh, C), dtype)],
            compiler_params=cparams,
        )(x)


if __name__ == "__main__":
    key = jax.random.PRNGKey(0)
    k1, k2, k3, k4, k5 = jax.random.split(key, 5)

    # --- conv path, single tile ---------------------------------------------
    B, C, L = 2, 128, 256
    x = jax.random.normal(k1, (B, C, L), dtype=jnp.float32)
    bound = 1.0 / (3 * C) ** 0.5
    w = jax.random.uniform(k2, (C, C, 3), jnp.float32, -bound, bound)
    b = jax.random.uniform(k3, (C,), jnp.float32, -bound, bound)

    out = jax.block_until_ready(downsample1d(x, w, b, with_conv=True))
    ref = lax.conv_general_dilated(
        x, w, window_strides=(2,), padding=((1, 1),),
        dimension_numbers=("NCH", "OIH", "NCH")) + b[None, :, None]
    assert out.shape == (B, C, (L - 1) // 2 + 1), out.shape
    assert jnp.allclose(out, ref, atol=2e-4, rtol=2e-4), \
        float(jnp.max(jnp.abs(out - ref)))

    # --- conv path: multi-tile, odd length, B==1 (halo + ragged tail) -------
    B2, C2, L2 = 1, 128, 1023
    x2 = jax.random.normal(k4, (B2, C2, L2), dtype=jnp.float32)
    out2 = jax.block_until_ready(downsample1d(x2, w, b, with_conv=True))
    ref2 = lax.conv_general_dilated(
        x2, w, window_strides=(2,), padding=((1, 1),),
        dimension_numbers=("NCH", "OIH", "NCH")) + b[None, :, None]
    assert out2.shape == (B2, C2, (L2 - 1) // 2 + 1), out2.shape
    assert jnp.allclose(out2, ref2, atol=2e-4, rtol=2e-4), \
        float(jnp.max(jnp.abs(out2 - ref2)))

    # --- pool path: even length ---------------------------------------------
    xp = jax.random.normal(k5, (2, 128, 512), dtype=jnp.float32)
    op = jax.block_until_ready(downsample1d(xp, with_conv=False))
    rp = xp.reshape(2, 128, 256, 2).mean(axis=-1)
    assert op.shape == (2, 128, 256), op.shape
    assert jnp.allclose(op, rp, atol=1e-5, rtol=1e-5)

    # --- pool path: odd length, multi-tile, B==1 -----------------------------
    op2 = jax.block_until_ready(downsample1d(x2, with_conv=False))
    rp2 = x2[:, :, :2 * (L2 // 2)].reshape(B2, C2, L2 // 2, 2).mean(axis=-1)
    assert op2.shape == (B2, C2, L2 // 2), op2.shape
    assert jnp.allclose(op2, rp2, atol=1e-5, rtol=1e-5)

    print("KERNEL_OK")
</pallas_src>

<mosaic_0001>
module attributes {stable_mosaic.version = 11 : i64} {
  func.func @_conv_kernel(%arg0: i32, %arg1: i32, %arg2: memref<1x128x256xf32, #tpu.memory_space<vmem>>, %arg3: memref<128x384xf32, #tpu.memory_space<vmem>>, %arg4: memref<128x1xf32, #tpu.memory_space<vmem>>, %arg5: memref<1x1x128xf32, #tpu.memory_space<vmem>>, %arg6: memref<1x128x128xf32, #tpu.memory_space<vmem>>, %arg7: memref<264x128xf32, #tpu.memory_space<vmem>>) attributes {dimension_semantics = [#tpu.dimension_semantics<parallel>, #tpu.dimension_semantics<parallel>], iteration_bounds = array<i64: 2, 1>, scalar_prefetch = 0 : i64, scratch_operands = 1 : i64, tpu.core_type = #tpu.core_type<tc>, window_params = [{transform_indices = @transform_0, window_bounds = array<i64: 1, 128, 256>}, {pipeline_mode = #tpu.pipeline_mode<synchronous>, transform_indices = @transform_1, window_bounds = array<i64: 128, 384>}, {pipeline_mode = #tpu.pipeline_mode<synchronous>, transform_indices = @transform_2, window_bounds = array<i64: 128, 1>}, {transform_indices = @transform_3, window_bounds = array<i64: 1, 1, 128>}, {transform_indices = @transform_4, window_bounds = array<i64: 1, 128, 128>}]} {
    %c0 = arith.constant 0 : index
    %c0_0 = arith.constant 0 : index
    %c0_1 = arith.constant 0 : index
    %0 = vector.load %arg2[%c0, %c0_0, %c0_1] : memref<1x128x256xf32, #tpu.memory_space<vmem>>, vector<1x128x256xf32>
    %1 = vector.shape_cast %0 : vector<1x128x256xf32> to vector<128x256xf32>
    %2 = tpu.transpose %1, [1, 0] : vector<128x256xf32> -> vector<256x128xf32>
    %c8 = arith.constant 8 : index
    %c0_2 = arith.constant 0 : index
    %3 = vector.load %arg7[%c8, %c0_2] : memref<264x128xf32, #tpu.memory_space<vmem>>, vector<256x128xf32>
    tpu.vector_store %arg7[%c8, %c0_2], %2 {strides = array<i32>} : memref<264x128xf32, #tpu.memory_space<vmem>>, vector<256x128xf32>,
    %c0_3 = arith.constant 0 : index
    %4 = arith.index_cast %arg1 : i32 to index
    %c0_4 = arith.constant 0 : index
    %5 = vector.load %arg5[%c0_3, %4, %c0_4] : memref<1x1x128xf32, #tpu.memory_space<vmem>>, vector<1x1x128xf32>
    %6 = vector.shape_cast %5 : vector<1x1x128xf32> to vector<1x128xf32>
    %c7 = arith.constant 7 : index
    %c0_5 = arith.constant 0 : index
    %7 = vector.load %arg7[%c7, %c0_5] : memref<264x128xf32, #tpu.memory_space<vmem>>, vector<1x128xf32>
    tpu.vector_store %arg7[%c7, %c0_5], %6 {strides = array<i32>} : memref<264x128xf32, #tpu.memory_space<vmem>>, vector<1x128xf32>,
    %c7_6 = arith.constant 7 : index
    %c0_7 = arith.constant 0 : index
    %8 = tpu.strided_load %arg7[%c7_6, %c0_7] {strides = array<i32: 2, 1>} : memref<264x128xf32, #tpu.memory_space<vmem>>, vector<128x128xf32>
    %c8_8 = arith.constant 8 : index
    %c0_9 = arith.constant 0 : index
    %9 = tpu.strided_load %arg7[%c8_8, %c0_9] {strides = array<i32: 2, 1>} : memref<264x128xf32, #tpu.memory_space<vmem>>, vector<128x128xf32>
    %c9 = arith.constant 9 : index
    %c0_10 = arith.constant 0 : index
    %10 = tpu.strided_load %arg7[%c9, %c0_10] {strides = array<i32: 2, 1>} : memref<264x128xf32, #tpu.memory_space<vmem>>, vector<128x128xf32>
    %11 = tpu.concatenate %8, %9, %10 in 1 : vector<128x128xf32>, vector<128x128xf32>, vector<128x128xf32> -> vector<128x384xf32>
    %c0_11 = arith.constant 0 : index
    %c0_12 = arith.constant 0 : index
    %12 = vector.load %arg3[%c0_11, %c0_12] : memref<128x384xf32, #tpu.memory_space<vmem>>, vector<128x384xf32>
    %cst = arith.constant dense<0.000000e+00> : vector<128x128xf32>
    %13 = tpu.matmul %12, %11, %cst {dimension_numbers = #tpu.dot_dimension_numbers<[1], [1], [0], [0], [0, 0, 1, 0], [], []>} : vector<128x384xf32>, vector<128x384xf32>, vector<128x128xf32> -> vector<128x128xf32>
    %c0_13 = arith.constant 0 : index
    %c0_14 = arith.constant 0 : index
    %14 = vector.load %arg4[%c0_13, %c0_14] : memref<128x1xf32, #tpu.memory_space<vmem>>, vector<128x1xf32>
    %15 = vector.broadcast %14 : vector<128x1xf32> to vector<128x128xf32>
    %16 = arith.addf %13, %15 : vector<128x128xf32>
    %c0_15 = arith.constant 0 : index
    %c0_16 = arith.constant 0 : index
    %c0_17 = arith.constant 0 : index
    %17 = vector.load %arg6[%c0_15, %c0_16, %c0_17] : memref<1x128x128xf32, #tpu.memory_space<vmem>>, vector<1x128x128xf32>
    %18 = vector.shape_cast %17 : vector<1x128x128xf32> to vector<128x128xf32>
    %19 = vector.shape_cast %16 : vector<128x128xf32> to vector<1x128x128xf32>
    tpu.vector_store %arg6[%c0_15, %c0_16, %c0_17], %19 {strides = array<i32>} : memref<1x128x128xf32, #tpu.memory_space<vmem>>, vector<1x128x128xf32>,
    return
  }
  func.func @transform_0(%arg0: i32, %arg1: i32) -> (i32, i32, i32) {
    %c0_i32 = arith.constant 0 : i32
    %c0_i32_0 = arith.constant 0 : i32
    return %arg0, %c0_i32, %arg1 : i32, i32, i32
  }
  func.func @transform_1(%arg0: i32, %arg1: i32) -> (i32, i32) {
    %c0_i32 = arith.constant 0 : i32
    %c0_i32_0 = arith.constant 0 : i32
    %c0_i32_1 = arith.constant 0 : i32
    return %c0_i32, %c0_i32_0 : i32, i32
  }
  func.func @transform_2(%arg0: i32, %arg1: i32) -> (i32, i32) {
    %c0_i32 = arith.constant 0 : i32
    %c0_i32_0 = arith.constant 0 : i32
    %c0_i32_1 = arith.constant 0 : i32
    return %c0_i32, %c0_i32_0 : i32, i32
  }
  func.func @transform_3(%arg0: i32, %arg1: i32) -> (i32, i32, i32) {
    %c0_i32 = arith.constant 0 : i32
    %c0_i32_0 = arith.constant 0 : i32
    %c0_i32_1 = arith.constant 0 : i32
    return %arg0, %c0_i32, %c0_i32_0 : i32, i32, i32
  }
  func.func @transform_4(%arg0: i32, %arg1: i32) -> (i32, i32, i32) {
    %c0_i32 = arith.constant 0 : i32
    %c0_i32_0 = arith.constant 0 : i32
    return %arg0, %c0_i32, %arg1 : i32, i32, i32
  }
}

</mosaic_0001>

<llo_original>
// kernel: tpu_custom_call.1
$region0: #{tpu_custom_call.1}
  #allocation0 [shape = 'u32[]', space=smem, size = 0x4, offset = 0x4, fixed_abs, tag = 'smem constant byte address 0x4 - core index']
  #allocation1 [shape = 'u32[72,128]{1,0:T(1,128)}', space=vmem, size = 0x9000, scoped, tag = 'internal scratch']
  #allocation2 [shape = 'f32[264,128]{1,0:T(8,128)}', space=vmem, size = 0x21000, scoped, tag = 'scratch operand']
  %s0 = inlined_call_operand.hbm [shape: f32[2,128,256], index: 0, kind: input, shape index: {}]
  %s1 = inlined_call_operand.hbm [shape: f32[128,384], index: 1, kind: input, shape index: {}]
  %s2 = inlined_call_operand.vmem [shape: f32[128,1], index: 2, kind: input, shape index: {}]
  %s3 = inlined_call_operand.vmem [shape: f32[2,1,128], index: 3, kind: input, shape index: {}]
  %s4 = inlined_call_operand.hbm [shape: f32[2,128,128], index: 4, kind: output, shape index: {}]
  %s5 = sld [smem:[#allocation0]]
  $region57: #{tpu_custom_call.1} parent=0
    _
  %s7 = ssub.s32 1, %s5
  %s8 = scalar_select 0, %s7, %s5
  $region1: #{tpu_custom_call.1} parent=0
    #allocation3 [shape = 'u8[262144]{0}', space=vmem, size = 0x40000, scoped, tag = 'input window, operand 0']
    #allocation4 [shape = 's32[2]{0}', space=sflag, size = 0x8, scoped, tag = 'scoped memory for tpu_custom_call.1']
    #allocation5 [shape = 's32[2]{0}', space=sflag, size = 0x8, scoped, tag = 'scoped memory for tpu_custom_call.1']
    #allocation6 [shape = 'u8[196608]{0}', space=vmem, size = 0x30000, scoped, tag = 'input window, operand 1, single buffered']
    #allocation7 [shape = 's32[1]{0}', space=sflag, size = 0x4, scoped, tag = 'scoped memory for tpu_custom_call.1']
    #allocation8 [shape = 'u8[131072]{0}', space=vmem, size = 0x20000, scoped, tag = 'output window, operand 0']
    %9 = vsyncpa [#allocation4], 0
    %s10 = scalar_lea.sflag [#allocation4], 1
    %11 = vsyncpa %s10, 0
    %12 = vsyncpa [#allocation7], 0
    %13 = vsyncpa [#allocation5], 0
    %s14 = scalar_lea.sflag [#allocation5], 1
    %15 = vsyncpa %s14, 0
    loop: start=0, step=1, limit=4
    $region2: #{tpu_custom_call.1} parent=1 // loop_pre_header
      _
    $region3: #{tpu_custom_call.1} parent=1 // loop_header
      %s17 = sphi 0, %s21
      %p18 = scmp.ge.s32.totalorder %s17, 4
      %s24 = sphi 0, %s36
      %s25 = sphi 0, %s32
      %s26 = sphi 0, %s24
      %s27 = sphi 0, %s25
      %s28 = sphi 0, %s26
      %s29 = sphi 0, %s27
      %s41 = sphi 0, %s43
      %s44 = sphi 0, %s41
      %s45 = sphi 0, %s44
      %s61 = sphi 0, %s45
      %s65 = sphi 0, %s65
      %s67 = sphi 0, %s65
      %s68 = sphi 0, %s67
      %s82 = sphi 0, %s68
      %s86 = sphi 0, %s86
      %s88 = sphi 0, %s86
      %s89 = sphi 0, %s88
      %s103 = sphi 0, %s89
      %s109 = sphi 0, %s111
      %s112 = sphi 0, %s109
      %s113 = sphi 0, %s112
      %s129 = sphi 0, %s113
      %s137 = sphi 0, %s139
      %s140 = sphi 0, %s137
      %s141 = sphi 0, %s140
      %s157 = sphi 0, %s141
    $region4: #{tpu_custom_call.1} parent=1 // loop_header_branch
      %20 = sbr.rel (%p18) target = $region8
    $region5: #{tpu_custom_call.1} parent=1 // loop_body
      %s22 = ssub.s32 %s17, 1
      %s23 = ssub.s32 %s17, 2
      %s30 = sadd.s32 1, %s25
      %p31 = scmp.ge.s32.totalorder %s30, 1
      %s32 = scalar_select %p31, 0, %s30
      %s33 = sadd.s32 1, %s24
      %s34 = scalar_select %p31, %s33, %s24
      %p35 = scmp.ge.s32.totalorder %s34, 2
      %s36 = scalar_select %p35, 0, %s34
      %s37 = ssub.s32 %s24, %s36
      %s38 = ssub.s32 %s25, %s32
      %s39 = sor.u32 %s37, %s38
      %p40 = scmp.eq.s32.totalorder %s39, 0
      %s42 = sadd.s32 %s41, 1
      %s43 = scalar_select %p40, %s41, %s42
      %p46 = pneg %p40
      %p47 = scmp.eq.s32.totalorder %s17, 1
      %p48 = por %p46, %p47
      %p49 = scmp.ne.s32.totalorder %s41, %s44
      %p50 = scmp.eq.s32.totalorder %s17, 0
      %p51 = por %p49, %p50
      %p52 = scmp.ne.s32.totalorder %s41, %s44
      %p53 = scmp.eq.s32.totalorder %s22, 1
      %p54 = por %p52, %p53
      %p55 = scmp.ne.s32.totalorder %s44, %s45
      %p56 = scmp.eq.s32.totalorder %s22, 0
      %p57 = por %p55, %p56
      %p58 = scmp.ne.s32.totalorder %s44, %s45
      %p59 = scmp.eq.s32.totalorder %s23, 1
      %p60 = por %p58, %p59
      %p62 = scmp.ne.s32.totalorder %s45, %s61
      %p63 = scmp.eq.s32.totalorder %s23, 0
      %p64 = por %p62, %p63
      %s66 = sadd.s32 %s65, 1
      %p69 = scmp.eq.s32.totalorder %s17, 1
      %p70 = scmp.ne.s32.totalorder %s65, %s67
      %p71 = scmp.eq.s32.totalorder %s17, 0
      %p72 = por %p70, %p71
      %p73 = scmp.ne.s32.totalorder %s65, %s67
      %p74 = scmp.eq.s32.totalorder %s22, 1
      %p75 = por %p73, %p74
      %p76 = scmp.ne.s32.totalorder %s67, %s68
      %p77 = scmp.eq.s32.totalorder %s22, 0
      %p78 = por %p76, %p77
      %p79 = scmp.ne.s32.totalorder %s67, %s68
      %p80 = scmp.eq.s32.totalorder %s23, 1
      %p81 = por %p79, %p80
      %p83 = scmp.ne.s32.totalorder %s68, %s82
      %p84 = scmp.eq.s32.totalorder %s23, 0
      %p85 = por %p83, %p84
      %s87 = sadd.s32 %s86, 1
      %p90 = scmp.eq.s32.totalorder %s17, 1
      %p91 = scmp.ne.s32.totalorder %s86, %s88
      %p92 = scmp.eq.s32.totalorder %s17, 0
      %p93 = por %p91, %p92
      %p94 = scmp.ne.s32.totalorder %s86, %s88
      %p95 = scmp.eq.s32.totalorder %s22, 1
      %p96 = por %p94, %p95
      %p97 = scmp.ne.s32.totalorder %s88, %s89
      %p98 = scmp.eq.s32.totalorder %s22, 0
      %p99 = por %p97, %p98
      %p100 = scmp.ne.s32.totalorder %s88, %s89
      %p101 = scmp.eq.s32.totalorder %s23, 1
      %p102 = por %p100, %p101
      %p104 = scmp.ne.s32.totalorder %s89, %s103
      %p105 = scmp.eq.s32.totalorder %s23, 0
      %p106 = por %p104, %p105
      %s107 = ssub.s32 %s24, %s36
      %p108 = scmp.eq.s32.totalorder %s107, 0
      %s110 = sadd.s32 %s109, 1
      %s111 = scalar_select %p108, %s109, %s110
      %p114 = pneg %p108
      %p115 = scmp.eq.s32.totalorder %s17, 1
      %p116 = por %p114, %p115
      %p117 = scmp.ne.s32.totalorder %s109, %s112
      %p118 = scmp.eq.s32.totalorder %s17, 0
      %p119 = por %p117, %p118
      %p120 = scmp.ne.s32.totalorder %s109, %s112
      %p121 = scmp.eq.s32.totalorder %s22, 1
      %p122 = por %p120, %p121
      %p123 = scmp.ne.s32.totalorder %s112, %s113
      %p124 = scmp.eq.s32.totalorder %s22, 0
      %p125 = por %p123, %p124
      %p126 = scmp.ne.s32.totalorder %s112, %s113
      %p127 = scmp.eq.s32.totalorder %s23, 1
      %p128 = por %p126, %p127
      %p130 = scmp.ne.s32.totalorder %s113, %s129
      %p131 = scmp.eq.s32.totalorder %s23, 0
      %p132 = por %p130, %p131
      %s133 = ssub.s32 %s24, %s36
      %s134 = ssub.s32 %s25, %s32
      %s135 = sor.u32 %s133, %s134
      %p136 = scmp.eq.s32.totalorder %s135, 0
      %s138 = sadd.s32 %s137, 1
      %s139 = scalar_select %p136, %s137, %s138
      %p142 = pneg %p136
      %p143 = scmp.eq.s32.totalorder %s17, 1
      %p144 = por %p142, %p143
      %p145 = scmp.ne.s32.totalorder %s137, %s140
      %p146 = scmp.eq.s32.totalorder %s17, 0
      %p147 = por %p145, %p146
      %p148 = scmp.ne.s32.totalorder %s137, %s140
      %p149 = scmp.eq.s32.totalorder %s22, 1
      %p150 = por %p148, %p149
      %p151 = scmp.ne.s32.totalorder %s140, %s141
      %p152 = scmp.eq.s32.totalorder %s22, 0
      %p153 = por %p151, %p152
      %p154 = scmp.ne.s32.totalorder %s140, %s141
      %p155 = scmp.eq.s32.totalorder %s23, 1
      %p156 = por %p154, %p155
      %p158 = scmp.ne.s32.totalorder %s141, %s157
      %p159 = scmp.eq.s32.totalorder %s23, 0
      %p160 = por %p158, %p159
      %p161 = scmp.le.s32.totalorder 1, %s17
      %p162 = scmp.lt.s32.totalorder %s17, 3
      %p163 = pnand %p161, %p162
      %p164 = pneg %p163
      // Predicated region
      $region9: #{tpu_custom_call.1} parent=5 // pred_check
        _
      $region10: #{tpu_custom_call.1} parent=5 // pred_check_branch
        %166 = sbr.rel (%p163) target = $region12
      $region11: #{tpu_custom_call.1} parent=5 // pred_region
        %s167 = ssub.s32 %s17, 1
        // Predicated region
        $region13: #{tpu_custom_call.1} parent=11 // pred_check
          %p168 = pneg %p78
        $region14: #{tpu_custom_call.1} parent=11 // pred_check_branch
          %170 = sbr.rel (%p168) target = $region16
        $region15: #{tpu_custom_call.1} parent=11 // pred_region
          %172 = vsyncadd [#allocation7], 0
          %s173 = sshll.u32 %s1, 4
          %s174 = int_to_ptr.hbm [resolvable:$true] %s173
          %s175 = sshll.u32 [#allocation6], 4
          %s176 = int_to_ptr.vmem [resolvable:$true] %s175
          %181 = dma.hbm_to_vmem [thread:$0]  %s174, 6144, %s176, [#allocation7], 384, 384, 24
        $region16: #{tpu_custom_call.1} parent=11 // pred_fallthru
          _
        // Predicated region
        $region17: #{tpu_custom_call.1} parent=11 // pred_check
          %p182 = pneg %p99
        $region18: #{tpu_custom_call.1} parent=11 // pred_check_branch
          %184 = sbr.rel (%p182) target = $region20
        $region19: #{tpu_custom_call.1} parent=11 // pred_region
          _
        $region20: #{tpu_custom_call.1} parent=11 // pred_fallthru
          _
      $region12: #{tpu_custom_call.1} parent=5 // pred_fallthru
        _
      %p185 = scmp.lt.s32.totalorder %s17, 2
      // Predicated region
      $region21: #{tpu_custom_call.1} parent=5 // pred_check
        %p186 = pneg %p185
      $region22: #{tpu_custom_call.1} parent=5 // pred_check_branch
        %188 = sbr.rel (%p186) target = $region24
      $region23: #{tpu_custom_call.1} parent=5 // pred_region
        // Predicated region
        $region25: #{tpu_custom_call.1} parent=23 // pred_check
          %p189 = pneg %p51
        $region26: #{tpu_custom_call.1} parent=23 // pred_check_branch
          %191 = sbr.rel (%p189) target = $region28
        $region27: #{tpu_custom_call.1} parent=23 // pred_region
          %s192 = sand.u32 %s41, 1
          %s193 = scalar_lea.sflag [#allocation4], %s192
          %s194 = sand.u32 %s41, 1
          %s195 = smul.addr %s194, 256
          %s196 = scalar_lea.vmem [#allocation3], %s195
          %s197 = smul.u32 2, %s25
          %199 = vsyncadd %s193, 0
          %s200 = smul.addr %s24, 32
          %s201 = sadd.s32 %s197, %s200
          %s202 = smul.addr %s201, 8
          %s203 = scalar_lea.hbm %s0, %s202
          %s204 = sshll.u32 %s203, 4
          %s205 = int_to_ptr.hbm [resolvable:$true] %s204
          %s206 = sshll.u32 %s196, 4
          %s207 = int_to_ptr.vmem [resolvable:$true] %s206
          %212 = dma.hbm_to_vmem [thread:$0]  %s205, 4096, %s207, %s193, 256, 256, 16
        $region28: #{tpu_custom_call.1} parent=23 // pred_fallthru
          _
        // Predicated region
        $region29: #{tpu_custom_call.1} parent=23 // pred_check
          %p213 = pneg %p119
        $region30: #{tpu_custom_call.1} parent=23 // pred_check_branch
          %215 = sbr.rel (%p213) target = $region32
        $region31: #{tpu_custom_call.1} parent=23 // pred_region
          %p216 = scmp.lt.s32.totalorder %s24, 1
          %s217 = scalar_select %p216, %s24, 1
          %s218 = scalar_lea.vmem %s3, %s217
        $region32: #{tpu_custom_call.1} parent=23 // pred_fallthru
          _
      $region24: #{tpu_custom_call.1} parent=5 // pred_fallthru
        _
      %p219 = scmp.le.s32.totalorder 1, %s17
      %p220 = scmp.lt.s32.totalorder %s17, 3
      %p221 = pnand %p219, %p220
      %p222 = pneg %p221
      // Predicated region
      $region33: #{tpu_custom_call.1} parent=5 // pred_check
        _
      $region34: #{tpu_custom_call.1} parent=5 // pred_check_branch
        %224 = sbr.rel (%p221) target = $region36
      $region35: #{tpu_custom_call.1} parent=5 // pred_region
        %s225 = ssub.s32 %s17, 1
        %s226 = sand.u32 %s44, 1
        %s227 = scalar_lea.sflag [#allocation4], %s226
        %s228 = sand.u32 %s44, 1
        %s229 = smul.addr %s228, 256
        %s230 = scalar_lea.vmem [#allocation3], %s229
        // Predicated region
        $region37: #{tpu_custom_call.1} parent=35 // pred_check
          %p231 = pneg %p57
        $region38: #{tpu_custom_call.1} parent=35 // pred_check_branch
          %233 = sbr.rel (%p231) target = $region40
        $region39: #{tpu_custom_call.1} parent=35 // pred_region
          %235 = dma.done %s227, 4096
        $region40: #{tpu_custom_call.1} parent=35 // pred_fallthru
          _
        // Predicated region
        $region41: #{tpu_custom_call.1} parent=35 // pred_check
          %p236 = pneg %p78
        $region42: #{tpu_custom_call.1} parent=35 // pred_check_branch
          %238 = sbr.rel (%p236) target = $region44
        $region43: #{tpu_custom_call.1} parent=35 // pred_region
          %240 = dma.done [#allocation7], 6144
        $region44: #{tpu_custom_call.1} parent=35 // pred_fallthru
          _
        %s241 = sand.u32 %s44, 1
        %s242 = scalar_lea.sflag [#allocation4], %s241
        %s243 = sand.u32 %s44, 1
        %s244 = smul.addr %s243, 256
        %s245 = scalar_lea.vmem [#allocation3], %s244
        %p246 = pneg %p57
        %p247 = pneg %p54
        %p248 = pneg %p78
        %p249 = pneg %p75
        %p250 = pneg %p99
        %p251 = pneg %p96
        %p252 = scmp.lt.s32.totalorder %s26, 1
        %s253 = scalar_select %p252, %s26, 1
        %s254 = scalar_lea.vmem %s3, %s253
        %p255 = pneg %p125
        %p256 = pneg %p122
        %p257 = pneg %p153
        %p258 = pneg %p150
        %s259 = sand.u32 %s140, 1
        %s260 = scalar_lea.sflag [#allocation5], %s259
        %s261 = sand.u32 %s140, 1
        %s262 = smul.addr %s261, 128
        %s263 = scalar_lea.vmem [#allocation8], %s262
        %s264 = smul.u32 2, %s27
        %p265 = scmp.lt.s32.totalorder %s26, 1
        %s266 = scalar_select %p265, %s26, 1
        %s267 = scalar_lea.vmem %s3, %s266
        %v268 = vld [vmem:[%s230] sm:$0xff]
        %v269 = vld [vmem:[%s230 + $0x8] sm:$0xff]
        %v270 = vld [vmem:[%s230 + $0x10] sm:$0xff]
        %v271 = vld [vmem:[%s230 + $0x18] sm:$0xff]
        %v272 = vld [vmem:[%s230 + $0x20] sm:$0xff]
        %v273 = vld [vmem:[%s230 + $0x28] sm:$0xff]
        %v274 = vld [vmem:[%s230 + $0x30] sm:$0xff]
        %v275 = vld [vmem:[%s230 + $0x38] sm:$0xff]
        %v276 = vld [vmem:[%s230 + $0x40] sm:$0xff]
        %v277 = vld [vmem:[%s230 + $0x48] sm:$0xff]
        %v278 = vld [vmem:[%s230 + $0x50] sm:$0xff]
        %v279 = vld [vmem:[%s230 + $0x58] sm:$0xff]
        %v280 = vld [vmem:[%s230 + $0x60] sm:$0xff]
        %v281 = vld [vmem:[%s230 + $0x68] sm:$0xff]
        %v282 = vld [vmem:[%s230 + $0x70] sm:$0xff]
        %v283 = vld [vmem:[%s230 + $0x78] sm:$0xff]
        %v284 = vld [vmem:[%s230 + $0x80] sm:$0xff]
        %v285 = vld [vmem:[%s230 + $0x88] sm:$0xff]
        %v286 = vld [vmem:[%s230 + $0x90] sm:$0xff]
        %v287 = vld [vmem:[%s230 + $0x98] sm:$0xff]
        %v288 = vld [vmem:[%s230 + $0xa0] sm:$0xff]
        %v289 = vld [vmem:[%s230 + $0xa8] sm:$0xff]
        %v290 = vld [vmem:[%s230 + $0xb0] sm:$0xff]
        %v291 = vld [vmem:[%s230 + $0xb8] sm:$0xff]
        %v292 = vld [vmem:[%s230 + $0xc0] sm:$0xff]
        %v293 = vld [vmem:[%s230 + $0xc8] sm:$0xff]
        %v294 = vld [vmem:[%s230 + $0xd0] sm:$0xff]
        %v295 = vld [vmem:[%s230 + $0xd8] sm:$0xff]
        %v296 = vld [vmem:[%s230 + $0xe0] sm:$0xff]
        %v297 = vld [vmem:[%s230 + $0xe8] sm:$0xff]
        %v298 = vld [vmem:[%s230 + $0xf0] sm:$0xff]
        %v299 = vld [vmem:[%s230 + $0xf8] sm:$0xff]
        %300 = vxpose.xlu0.b32.start [1/16] %v268, 128
        %301 = vxpose.xlu0.b32.cont [2/16] %v270, 128
        %302 = vxpose.xlu0.b32.cont [3/16] %v272, 128
        %303 = vxpose.xlu0.b32.cont [4/16] %v274, 128
        %304 = vxpose.xlu0.b32.cont [5/16] %v276, 128
        %305 = vxpose.xlu0.b32.cont [6/16] %v278, 128
        %306 = vxpose.xlu0.b32.cont [7/16] %v280, 128
        %307 = vxpose.xlu0.b32.cont [8/16] %v282, 128
        %308 = vxpose.xlu0.b32.cont [9/16] %v284, 128
        %309 = vxpose.xlu0.b32.cont [10/16] %v286, 128
        %310 = vxpose.xlu0.b32.cont [11/16] %v288, 128
        %311 = vxpose.xlu0.b32.cont [12/16] %v290, 128
        %312 = vxpose.xlu0.b32.cont [13/16] %v292, 128
        %313 = vxpose.xlu0.b32.cont [14/16] %v294, 128
        %314 = vxpose.xlu0.b32.cont [15/16] %v296, 128
        %315 = vxpose.xlu0.b32.end [16/16] %v298, 128
        %v316 = vpop.trf.xlu0
        %v317 = vpop.trf.xlu0
        %v318 = vpop.trf.xlu0
        %v319 = vpop.trf.xlu0
        %v320 = vpop.trf.xlu0
        %v321 = vpop.trf.xlu0
        %v322 = vpop.trf.xlu0
        %v323 = vpop.trf.xlu0
        %v324 = vpop.trf.xlu0
        %v325 = vpop.trf.xlu0
        %v326 = vpop.trf.xlu0
        %v327 = vpop.trf.xlu0
        %v328 = vpop.trf.xlu0
        %v329 = vpop.trf.xlu0
        %v330 = vpop.trf.xlu0
        %v331 = vpop.trf.xlu0
        %332 = vxpose.xlu0.b32.start [1/16] %v269, 128
        %333 = vxpose.xlu0.b32.cont [2/16] %v271, 128
        %334 = vxpose.xlu0.b32.cont [3/16] %v273, 128
        %335 = vxpose.xlu0.b32.cont [4/16] %v275, 128
        %336 = vxpose.xlu0.b32.cont [5/16] %v277, 128
        %337 = vxpose.xlu0.b32.cont [6/16] %v279, 128
        %338 = vxpose.xlu0.b32.cont [7/16] %v281, 128
        %339 = vxpose.xlu0.b32.cont [8/16] %v283, 128
        %340 = vxpose.xlu0.b32.cont [9/16] %v285, 128
        %341 = vxpose.xlu0.b32.cont [10/16] %v287, 128
        %342 = vxpose.xlu0.b32.cont [11/16] %v289, 128
        %343 = vxpose.xlu0.b32.cont [12/16] %v291, 128
        %344 = vxpose.xlu0.b32.cont [13/16] %v293, 128
        %345 = vxpose.xlu0.b32.cont [14/16] %v295, 128
        %346 = vxpose.xlu0.b32.cont [15/16] %v297, 128
        %347 = vxpose.xlu0.b32.end [16/16] %v299, 128
        %v348 = vpop.trf.xlu0
        %v349 = vpop.trf.xlu0
        %v350 = vpop.trf.xlu0
        %v351 = vpop.trf.xlu0
        %v352 = vpop.trf.xlu0
        %v353 = vpop.trf.xlu0
        %v354 = vpop.trf.xlu0
        %v355 = vpop.trf.xlu0
        %v356 = vpop.trf.xlu0
        %v357 = vpop.trf.xlu0
        %v358 = vpop.trf.xlu0
        %v359 = vpop.trf.xlu0
        %v360 = vpop.trf.xlu0
        %v361 = vpop.trf.xlu0
        %v362 = vpop.trf.xlu0
        %v363 = vpop.trf.xlu0
        %364 = vst [vmem:[#allocation2 + $0x8] sm:$0xff] %v316
        %365 = vst [vmem:[#allocation2 + $0x10] sm:$0xff] %v317
        %366 = vst [vmem:[#allocation2 + $0x18] sm:$0xff] %v318
        %367 = vst [vmem:[#allocation2 + $0x20] sm:$0xff] %v319
        %368 = vst [vmem:[#allocation2 + $0x28] sm:$0xff] %v320
        %369 = vst [vmem:[#allocation2 + $0x30] sm:$0xff] %v321
        %370 = vst [vmem:[#allocation2 + $0x38] sm:$0xff] %v322
        %371 = vst [vmem:[#allocation2 + $0x40] sm:$0xff] %v323
        %372 = vst [vmem:[#allocation2 + $0x48] sm:$0xff] %v324
        %373 = vst [vmem:[#allocation2 + $0x50] sm:$0xff] %v325
        %374 = vst [vmem:[#allocation2 + $0x58] sm:$0xff] %v326
        %375 = vst [vmem:[#allocation2 + $0x60] sm:$0xff] %v327
        %376 = vst [vmem:[#allocation2 + $0x68] sm:$0xff] %v328
        %377 = vst [vmem:[#allocation2 + $0x70] sm:$0xff] %v329
        %378 = vst [vmem:[#allocation2 + $0x78] sm:$0xff] %v330
        %379 = vst [vmem:[#allocation2 + $0x80] sm:$0xff] %v331
        %380 = vst [vmem:[#allocation2 + $0x88] sm:$0xff] %v348
        %381 = vst [vmem:[#allocation2 + $0x90] sm:$0xff] %v349
        %382 = vst [vmem:[#allocation2 + $0x98] sm:$0xff] %v350
        %383 = vst [vmem:[#allocation2 + $0xa0] sm:$0xff] %v351
        %384 = vst [vmem:[#allocation2 + $0xa8] sm:$0xff] %v352
        %385 = vst [vmem:[#allocation2 + $0xb0] sm:$0xff] %v353
        %386 = vst [vmem:[#allocation2 + $0xb8] sm:$0xff] %v354
        %387 = vst [vmem:[#allocation2 + $0xc0] sm:$0xff] %v355
        %388 = vst [vmem:[#allocation2 + $0xc8] sm:$0xff] %v356
        %389 = vst [vmem:[#allocation2 + $0xd0] sm:$0xff] %v357
        %390 = vst [vmem:[#allocation2 + $0xd8] sm:$0xff] %v358
        %391 = vst [vmem:[#allocation2 + $0xe0] sm:$0xff] %v359
        %392 = vst [vmem:[#allocation2 + $0xe8] sm:$0xff] %v360
        %393 = vst [vmem:[#allocation2 + $0xf0] sm:$0xff] %v361
        %394 = vst [vmem:[#allocation2 + $0xf8] sm:$0xff] %v362
        %395 = vst [vmem:[#allocation2 + $0x100] sm:$0xff] %v363
        %s396 = scalar_lea.vmem %s267, %s27
        %v397 = vld [vmem:[%s396] sm:$0x1]
        %398 = vst [vmem:[#allocation2 + $0x7] sm:$0x1] %v397
        %s399 = scalar_lea.vmem [#allocation2], 7
        %v400 = vld [vmem:[%s399] ss:$2 sm:$0xff]
        %s401 = scalar_lea.vmem [#allocation2], 23
        %v402 = vld [vmem:[%s401] ss:$2 sm:$0xff]
        %s403 = scalar_lea.vmem [#allocation2], 39
        %v404 = vld [vmem:[%s403] ss:$2 sm:$0xff]
        %s405 = scalar_lea.vmem [#allocation2], 55
        %v406 = vld [vmem:[%s405] ss:$2 sm:$0xff]
        %s407 = scalar_lea.vmem [#allocation2], 71
        %v408 = vld [vmem:[%s407] ss:$2 sm:$0xff]
        %s409 = scalar_lea.vmem [#allocation2], 87
        %v410 = vld [vmem:[%s409] ss:$2 sm:$0xff]
        %s411 = scalar_lea.vmem [#allocation2], 103
        %v412 = vld [vmem:[%s411] ss:$2 sm:$0xff]
        %s413 = scalar_lea.vmem [#allocation2], 119
        %v414 = vld [vmem:[%s413] ss:$2 sm:$0xff]
        %s415 = scalar_lea.vmem [#allocation2], 135
        %v416 = vld [vmem:[%s415] ss:$2 sm:$0xff]
        %s417 = scalar_lea.vmem [#allocation2], 151
        %v418 = vld [vmem:[%s417] ss:$2 sm:$0xff]
        %s419 = scalar_lea.vmem [#allocation2], 167
        %v420 = vld [vmem:[%s419] ss:$2 sm:$0xff]
        %s421 = scalar_lea.vmem [#allocation2], 183
        %v422 = vld [vmem:[%s421] ss:$2 sm:$0xff]
        %s423 = scalar_lea.vmem [#allocation2], 199
        %v424 = vld [vmem:[%s423] ss:$2 sm:$0xff]
        %s425 = scalar_lea.vmem [#allocation2], 215
        %v426 = vld [vmem:[%s425] ss:$2 sm:$0xff]
        %s427 = scalar_lea.vmem [#allocation2], 231
        %v428 = vld [vmem:[%s427] ss:$2 sm:$0xff]
        %s429 = scalar_lea.vmem [#allocation2], 247
        %v430 = vld [vmem:[%s429] ss:$2 sm:$0xff]
        %s431 = scalar_lea.vmem [#allocation2], 8
        %v432 = vld [vmem:[%s431] ss:$2 sm:$0xff]
        %s433 = scalar_lea.vmem [#allocation2], 24
        %v434 = vld [vmem:[%s433] ss:$2 sm:$0xff]
        %s435 = scalar_lea.vmem [#allocation2], 40
        %v436 = vld [vmem:[%s435] ss:$2 sm:$0xff]
        %s437 = scalar_lea.vmem [#allocation2], 56
        %v438 = vld [vmem:[%s437] ss:$2 sm:$0xff]
        %s439 = scalar_lea.vmem [#allocation2], 72
        %v440 = vld [vmem:[%s439] ss:$2 sm:$0xff]
        %s441 = scalar_lea.vmem [#allocation2], 88
        %v442 = vld [vmem:[%s441] ss:$2 sm:$0xff]
        %s443 = scalar_lea.vmem [#allocation2], 104
        %v444 = vld [vmem:[%s443] ss:$2 sm:$0xff]
        %s445 = scalar_lea.vmem [#allocation2], 120
        %v446 = vld [vmem:[%s445] ss:$2 sm:$0xff]
        %s447 = scalar_lea.vmem [#allocation2], 136
        %v448 = vld [vmem:[%s447] ss:$2 sm:$0xff]
        %s449 = scalar_lea.vmem [#allocation2], 152
        %v450 = vld [vmem:[%s449] ss:$2 sm:$0xff]
        %s451 = scalar_lea.vmem [#allocation2], 168
        %v452 = vld [vmem:[%s451] ss:$2 sm:$0xff]
        %s453 = scalar_lea.vmem [#allocation2], 184
        %v454 = vld [vmem:[%s453] ss:$2 sm:$0xff]
        %s455 = scalar_lea.vmem [#allocation2], 200
        %v456 = vld [vmem:[%s455] ss:$2 sm:$0xff]
        %s457 = scalar_lea.vmem [#allocation2], 216
        %v458 = vld [vmem:[%s457] ss:$2 sm:$0xff]
        %s459 = scalar_lea.vmem [#allocation2], 232
        %v460 = vld [vmem:[%s459] ss:$2 sm:$0xff]
        %s461 = scalar_lea.vmem [#allocation2], 248
        %v462 = vld [vmem:[%s461] ss:$2 sm:$0xff]
        %s463 = scalar_lea.vmem [#allocation2], 9
        %v464 = vld [vmem:[%s463] ss:$2 sm:$0xff]
        %s465 = scalar_lea.vmem [#allocation2], 25
        %v466 = vld [vmem:[%s465] ss:$2 sm:$0xff]
        %s467 = scalar_lea.vmem [#allocation2], 41
        %v468 = vld [vmem:[%s467] ss:$2 sm:$0xff]
        %s469 = scalar_lea.vmem [#allocation2], 57
        %v470 = vld [vmem:[%s469] ss:$2 sm:$0xff]
        %s471 = scalar_lea.vmem [#allocation2], 73
        %v472 = vld [vmem:[%s471] ss:$2 sm:$0xff]
        %s473 = scalar_lea.vmem [#allocation2], 89
        %v474 = vld [vmem:[%s473] ss:$2 sm:$0xff]
        %s475 = scalar_lea.vmem [#allocation2], 105
        %v476 = vld [vmem:[%s475] ss:$2 sm:$0xff]
        %s477 = scalar_lea.vmem [#allocation2], 121
        %v478 = vld [vmem:[%s477] ss:$2 sm:$0xff]
        %s479 = scalar_lea.vmem [#allocation2], 137
        %v480 = vld [vmem:[%s479] ss:$2 sm:$0xff]
        %s481 = scalar_lea.vmem [#allocation2], 153
        %v482 = vld [vmem:[%s481] ss:$2 sm:$0xff]
        %s483 = scalar_lea.vmem [#allocation2], 169
        %v484 = vld [vmem:[%s483] ss:$2 sm:$0xff]
        %s485 = scalar_lea.vmem [#allocation2], 185
        %v486 = vld [vmem:[%s485] ss:$2 sm:$0xff]
        %s487 = scalar_lea.vmem [#allocation2], 201
        %v488 = vld [vmem:[%s487] ss:$2 sm:$0xff]
        %s489 = scalar_lea.vmem [#allocation2], 217
        %v490 = vld [vmem:[%s489] ss:$2 sm:$0xff]
        %s491 = scalar_lea.vmem [#allocation2], 233
        %v492 = vld [vmem:[%s491] ss:$2 sm:$0xff]
        %s493 = scalar_lea.vmem [#allocation2], 249
        %v494 = vld [vmem:[%s493] ss:$2 sm:$0xff]
        %v495 = vld [vmem:[#allocation6] sm:$0xff]
        %v496 = vld [vmem:[#allocation6 + $0x8] sm:$0xff]
        %v497 = vld [vmem:[#allocation6 + $0x10] sm:$0xff]
        %v498 = vld [vmem:[#allocation6 + $0x18] sm:$0xff]
        %v499 = vld [vmem:[#allocation6 + $0x20] sm:$0xff]
        %v500 = vld [vmem:[#allocation6 + $0x28] sm:$0xff]
        %v501 = vld [vmem:[#allocation6 + $0x30] sm:$0xff]
        %v502 = vld [vmem:[#allocation6 + $0x38] sm:$0xff]
        %v503 = vld [vmem:[#allocation6 + $0x40] sm:$0xff]
        %v504 = vld [vmem:[#allocation6 + $0x48] sm:$0xff]
        %v505 = vld [vmem:[#allocation6 + $0x50] sm:$0xff]
        %v506 = vld [vmem:[#allocation6 + $0x58] sm:$0xff]
        %v507 = vld [vmem:[#allocation6 + $0x60] sm:$0xff]
        %v508 = vld [vmem:[#allocation6 + $0x68] sm:$0xff]
        %v509 = vld [vmem:[#allocation6 + $0x70] sm:$0xff]
        %v510 = vld [vmem:[#allocation6 + $0x78] sm:$0xff]
        %v511 = vld [vmem:[#allocation6 + $0x80] sm:$0xff]
        %v512 = vld [vmem:[#allocation6 + $0x88] sm:$0xff]
        %v513 = vld [vmem:[#allocation6 + $0x90] sm:$0xff]
        %v514 = vld [vmem:[#allocation6 + $0x98] sm:$0xff]
        %v515 = vld [vmem:[#allocation6 + $0xa0] sm:$0xff]
        %v516 = vld [vmem:[#allocation6 + $0xa8] sm:$0xff]
        %v517 = vld [vmem:[#allocation6 + $0xb0] sm:$0xff]
        %v518 = vld [vmem:[#allocation6 + $0xb8] sm:$0xff]
        %v519 = vld [vmem:[#allocation6 + $0xc0] sm:$0xff]
        %v520 = vld [vmem:[#allocation6 + $0xc8] sm:$0xff]
        %v521 = vld [vmem:[#allocation6 + $0xd0] sm:$0xff]
        %v522 = vld [vmem:[#allocation6 + $0xd8] sm:$0xff]
        %v523 = vld [vmem:[#allocation6 + $0xe0] sm:$0xff]
        %v524 = vld [vmem:[#allocation6 + $0xe8] sm:$0xff]
        %v525 = vld [vmem:[#allocation6 + $0xf0] sm:$0xff]
        %v526 = vld [vmem:[#allocation6 + $0xf8] sm:$0xff]
        %v527 = vld [vmem:[#allocation6 + $0x100] sm:$0xff]
        %v528 = vld [vmem:[#allocation6 + $0x108] sm:$0xff]
        %v529 = vld [vmem:[#allocation6 + $0x110] sm:$0xff]
        %v530 = vld [vmem:[#allocation6 + $0x118] sm:$0xff]
        %v531 = vld [vmem:[#allocation6 + $0x120] sm:$0xff]
        %v532 = vld [vmem:[#allocation6 + $0x128] sm:$0xff]
        %v533 = vld [vmem:[#allocation6 + $0x130] sm:$0xff]
        %v534 = vld [vmem:[#allocation6 + $0x138] sm:$0xff]
        %v535 = vld [vmem:[#allocation6 + $0x140] sm:$0xff]
        %v536 = vld [vmem:[#allocation6 + $0x148] sm:$0xff]
        %v537 = vld [vmem:[#allocation6 + $0x150] sm:$0xff]
        %v538 = vld [vmem:[#allocation6 + $0x158] sm:$0xff]
        %v539 = vld [vmem:[#allocation6 + $0x160] sm:$0xff]
        %v540 = vld [vmem:[#allocation6 + $0x168] sm:$0xff]
        %v541 = vld [vmem:[#allocation6 + $0x170] sm:$0xff]
        %v542 = vld [vmem:[#allocation6 + $0x178] sm:$0xff]
        %v543 = vld [vmem:[%s2] sm:$0xff]
        %v544 = vld [vmem:[%s2 + $0x8] sm:$0xff]
        %v545 = vld [vmem:[%s2 + $0x10] sm:$0xff]
        %v546 = vld [vmem:[%s2 + $0x18] sm:$0xff]
        %v547 = vld [vmem:[%s2 + $0x20] sm:$0xff]
        %v548 = vld [vmem:[%s2 + $0x28] sm:$0xff]
        %v549 = vld [vmem:[%s2 + $0x30] sm:$0xff]
        %v550 = vld [vmem:[%s2 + $0x38] sm:$0xff]
        %v551 = vld [vmem:[%s2 + $0x40] sm:$0xff]
        %v552 = vld [vmem:[%s2 + $0x48] sm:$0xff]
        %v553 = vld [vmem:[%s2 + $0x50] sm:$0xff]
        %v554 = vld [vmem:[%s2 + $0x58] sm:$0xff]
        %v555 = vld [vmem:[%s2 + $0x60] sm:$0xff]
        %v556 = vld [vmem:[%s2 + $0x68] sm:$0xff]
        %v557 = vld [vmem:[%s2 + $0x70] sm:$0xff]
        %v558 = vld [vmem:[%s2 + $0x78] sm:$0xff]
        %560 = vset.pattern.permute.xlu0 0
        %561 = vperm.xlu0 %560, %v543
        %v562 = vpop.permute.xlu0 %561
        %565 = vset.pattern.permute.xlu0 0
        %566 = vperm.xlu0 %565, %v544
        %v567 = vpop.permute.xlu0 %566
        %570 = vset.pattern.permute.xlu0 0
        %571 = vperm.xlu0 %570, %v545
        %v572 = vpop.permute.xlu0 %571
        %575 = vset.pattern.permute.xlu0 0
        %576 = vperm.xlu0 %575, %v546
        %v577 = vpop.permute.xlu0 %576
        %580 = vset.pattern.permute.xlu0 0
        %581 = vperm.xlu0 %580, %v547
        %v582 = vpop.permute.xlu0 %581
        %585 = vset.pattern.permute.xlu0 0
        %586 = vperm.xlu0 %585, %v548
        %v587 = vpop.permute.xlu0 %586
        %590 = vset.pattern.permute.xlu0 0
        %591 = vperm.xlu0 %590, %v549
        %v592 = vpop.permute.xlu0 %591
        %595 = vset.pattern.permute.xlu0 0
        %596 = vperm.xlu0 %595, %v550
        %v597 = vpop.permute.xlu0 %596
        %600 = vset.pattern.permute.xlu0 0
        %601 = vperm.xlu0 %600, %v551
        %v602 = vpop.permute.xlu0 %601
        %605 = vset.pattern.permute.xlu0 0
        %606 = vperm.xlu0 %605, %v552
        %v607 = vpop.permute.xlu0 %606
        %610 = vset.pattern.permute.xlu0 0
        %611 = vperm.xlu0 %610, %v553
        %v612 = vpop.permute.xlu0 %611
        %615 = vset.pattern.permute.xlu0 0
        %616 = vperm.xlu0 %615, %v554
        %v617 = vpop.permute.xlu0 %616
        %620 = vset.pattern.permute.xlu0 0
        %621 = vperm.xlu0 %620, %v555
        %v622 = vpop.permute.xlu0 %621
        %625 = vset.pattern.permute.xlu0 0
        %626 = vperm.xlu0 %625, %v556
        %v627 = vpop.permute.xlu0 %626
        %630 = vset.pattern.permute.xlu0 0
        %631 = vperm.xlu0 %630, %v557
        %v632 = vpop.permute.xlu0 %631
        %635 = vset.pattern.permute.xlu0 0
        %636 = vperm.xlu0 %635, %v558
        %v637 = vpop.permute.xlu0 %636
        %639 = vmatpush.xpose.msra.mxu0 %v430
        %640 = vmatpush.xpose.msra.mxu0 %v428
        %641 = vmatpush.xpose.msra.mxu0 %v426
        %642 = vmatpush.xpose.msra.mxu0 %v424
        %643 = vmatpush.xpose.msra.mxu0 %v422
        %644 = vmatpush.xpose.msra.mxu0 %v420
        %645 = vmatpush.xpose.msra.mxu0 %v418
        %646 = vmatpush.xpose.msra.mxu0 %v416
        %647 = vmatpush.xpose.msra.mxu0 %v414
        %648 = vmatpush.xpose.msra.mxu0 %v412
        %649 = vmatpush.xpose.msra.mxu0 %v410
        %650 = vmatpush.xpose.msra.mxu0 %v408
        %651 = vmatpush.xpose.msra.mxu0 %v406
        %652 = vmatpush.xpose.msra.mxu0 %v404
        %653 = vmatpush.xpose.msra.mxu0 %v402
        %654 = vmatpush.xpose.msra.mxu0 %v400
        %655 = vmatmul.f32.gmra.mxu0 %v495
        %v656 = vpop.f32.mrf.mxu0
        %v657 = vadd.f32 %v562, %v656
        %658 = vmatmul.f32.gmra.mxu0 %v498
        %v659 = vpop.f32.mrf.mxu0
        %v660 = vadd.f32 %v567, %v659
        %661 = vmatmul.f32.gmra.mxu0 %v501
        %v662 = vpop.f32.mrf.mxu0
        %v663 = vadd.f32 %v572, %v662
        %664 = vmatmul.f32.gmra.mxu0 %v504
        %v665 = vpop.f32.mrf.mxu0
        %v666 = vadd.f32 %v577, %v665
        %667 = vmatmul.f32.gmra.mxu0 %v507
        %v668 = vpop.f32.mrf.mxu0
        %v669 = vadd.f32 %v582, %v668
        %670 = vmatmul.f32.gmra.mxu0 %v510
        %v671 = vpop.f32.mrf.mxu0
        %v672 = vadd.f32 %v587, %v671
        %673 = vmatmul.f32.gmra.mxu0 %v513
        %v674 = vpop.f32.mrf.mxu0
        %v675 = vadd.f32 %v592, %v674
        %676 = vmatmul.f32.gmra.mxu0 %v516
        %v677 = vpop.f32.mrf.mxu0
        %v678 = vadd.f32 %v597, %v677
        %679 = vmatmul.f32.gmra.mxu0 %v519
        %v680 = vpop.f32.mrf.mxu0
        %v681 = vadd.f32 %v602, %v680
        %682 = vmatmul.f32.gmra.mxu0 %v522
        %v683 = vpop.f32.mrf.mxu0
        %v684 = vadd.f32 %v607, %v683
        %685 = vmatmul.f32.gmra.mxu0 %v525
        %v686 = vpop.f32.mrf.mxu0
        %v687 = vadd.f32 %v612, %v686
        %688 = vmatmul.f32.gmra.mxu0 %v528
        %v689 = vpop.f32.mrf.mxu0
        %v690 = vadd.f32 %v617, %v689
        %691 = vmatmul.f32.gmra.mxu0 %v531
        %v692 = vpop.f32.mrf.mxu0
        %v693 = vadd.f32 %v622, %v692
        %694 = vmatmul.f32.gmra.mxu0 %v534
        %v695 = vpop.f32.mrf.mxu0
        %v696 = vadd.f32 %v627, %v695
        %697 = vmatmul.f32.gmra.mxu0 %v537
        %v698 = vpop.f32.mrf.mxu0
        %v699 = vadd.f32 %v632, %v698
        %700 = vmatmul.f32.gmra.mxu0 %v540
        %v701 = vpop.f32.mrf.mxu0
        %v702 = vadd.f32 %v637, %v701
        %703 = vdwg.mxu0
        %704 = vmatpush.xpose.msra.mxu0 %v462
        %705 = vmatpush.xpose.msra.mxu0 %v460
        %706 = vmatpush.xpose.msra.mxu0 %v458
        %707 = vmatpush.xpose.msra.mxu0 %v456
        %708 = vmatpush.xpose.msra.mxu0 %v454
        %709 = vmatpush.xpose.msra.mxu0 %v452
        %710 = vmatpush.xpose.msra.mxu0 %v450
        %711 = vmatpush.xpose.msra.mxu0 %v448
        %712 = vmatpush.xpose.msra.mxu0 %v446
        %713 = vmatpush.xpose.msra.mxu0 %v444
        %714 = vmatpush.xpose.msra.mxu0 %v442
        %715 = vmatpush.xpose.msra.mxu0 %v440
        %716 = vmatpush.xpose.msra.mxu0 %v438
        %717 = vmatpush.xpose.msra.mxu0 %v436
        %718 = vmatpush.xpose.msra.mxu0 %v434
        %719 = vmatpush.xpose.msra.mxu0 %v432
        %720 = vmatmul.f32.gmra.mxu0 %v496
        %v721 = vpop.f32.mrf.mxu0
        %v722 = vadd.f32 %v657, %v721
        %723 = vmatmul.f32.gmra.mxu0 %v499
        %v724 = vpop.f32.mrf.mxu0
        %v725 = vadd.f32 %v660, %v724
        %726 = vmatmul.f32.gmra.mxu0 %v502
        %v727 = vpop.f32.mrf.mxu0
        %v728 = vadd.f32 %v663, %v727
        %729 = vmatmul.f32.gmra.mxu0 %v505
        %v730 = vpop.f32.mrf.mxu0
        %v731 = vadd.f32 %v666, %v730
        %732 = vmatmul.f32.gmra.mxu0 %v508
        %v733 = vpop.f32.mrf.mxu0
        %v734 = vadd.f32 %v669, %v733
        %735 = vmatmul.f32.gmra.mxu0 %v511
        %v736 = vpop.f32.mrf.mxu0
        %v737 = vadd.f32 %v672, %v736
        %738 = vmatmul.f32.gmra.mxu0 %v514
        %v739 = vpop.f32.mrf.mxu0
        %v740 = vadd.f32 %v675, %v739
        %741 = vmatmul.f32.gmra.mxu0 %v517
        %v742 = vpop.f32.mrf.mxu0
        %v743 = vadd.f32 %v678, %v742
        %744 = vmatmul.f32.gmra.mxu0 %v520
        %v745 = vpop.f32.mrf.mxu0
        %v746 = vadd.f32 %v681, %v745
        %747 = vmatmul.f32.gmra.mxu0 %v523
        %v748 = vpop.f32.mrf.mxu0
        %v749 = vadd.f32 %v684, %v748
        %750 = vmatmul.f32.gmra.mxu0 %v526
        %v751 = vpop.f32.mrf.mxu0
        %v752 = vadd.f32 %v687, %v751
        %753 = vmatmul.f32.gmra.mxu0 %v529
        %v754 = vpop.f32.mrf.mxu0
        %v755 = vadd.f32 %v690, %v754
        %756 = vmatmul.f32.gmra.mxu0 %v532
        %v757 = vpop.f32.mrf.mxu0
        %v758 = vadd.f32 %v693, %v757
        %759 = vmatmul.f32.gmra.mxu0 %v535
        %v760 = vpop.f32.mrf.mxu0
        %v761 = vadd.f32 %v696, %v760
        %762 = vmatmul.f32.gmra.mxu0 %v538
        %v763 = vpop.f32.mrf.mxu0
        %v764 = vadd.f32 %v699, %v763
        %765 = vmatmul.f32.gmra.mxu0 %v541
        %v766 = vpop.f32.mrf.mxu0
        %v767 = vadd.f32 %v702, %v766
        %768 = vdwg.mxu0
        %769 = vmatpush.xpose.msra.mxu0 %v494
        %770 = vmatpush.xpose.msra.mxu0 %v492
        %771 = vmatpush.xpose.msra.mxu0 %v490
        %772 = vmatpush.xpose.msra.mxu0 %v488
        %773 = vmatpush.xpose.msra.mxu0 %v486
        %774 = vmatpush.xpose.msra.mxu0 %v484
        %775 = vmatpush.xpose.msra.mxu0 %v482
        %776 = vmatpush.xpose.msra.mxu0 %v480
        %777 = vmatpush.xpose.msra.mxu0 %v478
        %778 = vmatpush.xpose.msra.mxu0 %v476
        %779 = vmatpush.xpose.msra.mxu0 %v474
        %780 = vmatpush.xpose.msra.mxu0 %v472
        %781 = vmatpush.xpose.msra.mxu0 %v470
        %782 = vmatpush.xpose.msra.mxu0 %v468
        %783 = vmatpush.xpose.msra.mxu0 %v466
        %784 = vmatpush.xpose.msra.mxu0 %v464
        %785 = vmatmul.f32.gmra.mxu0 %v497
        %v786 = vpop.f32.mrf.mxu0
        %v787 = vadd.f32 %v722, %v786
        %788 = vmatmul.f32.gmra.mxu0 %v500
        %v789 = vpop.f32.mrf.mxu0
        %v790 = vadd.f32 %v725, %v789
        %791 = vmatmul.f32.gmra.mxu0 %v503
        %v792 = vpop.f32.mrf.mxu0
        %v793 = vadd.f32 %v728, %v792
        %794 = vmatmul.f32.gmra.mxu0 %v506
        %v795 = vpop.f32.mrf.mxu0
        %v796 = vadd.f32 %v731, %v795
        %797 = vmatmul.f32.gmra.mxu0 %v509
        %v798 = vpop.f32.mrf.mxu0
        %v799 = vadd.f32 %v734, %v798
        %800 = vmatmul.f32.gmra.mxu0 %v512
        %v801 = vpop.f32.mrf.mxu0
        %v802 = vadd.f32 %v737, %v801
        %803 = vmatmul.f32.gmra.mxu0 %v515
        %v804 = vpop.f32.mrf.mxu0
        %v805 = vadd.f32 %v740, %v804
        %806 = vmatmul.f32.gmra.mxu0 %v518
        %v807 = vpop.f32.mrf.mxu0
        %v808 = vadd.f32 %v743, %v807
        %809 = vmatmul.f32.gmra.mxu0 %v521
        %v810 = vpop.f32.mrf.mxu0
        %v811 = vadd.f32 %v746, %v810
        %812 = vmatmul.f32.gmra.mxu0 %v524
        %v813 = vpop.f32.mrf.mxu0
        %v814 = vadd.f32 %v749, %v813
        %815 = vmatmul.f32.gmra.mxu0 %v527
        %v816 = vpop.f32.mrf.mxu0
        %v817 = vadd.f32 %v752, %v816
        %818 = vmatmul.f32.gmra.mxu0 %v530
        %v819 = vpop.f32.mrf.mxu0
        %v820 = vadd.f32 %v755, %v819
        %821 = vmatmul.f32.gmra.mxu0 %v533
        %v822 = vpop.f32.mrf.mxu0
        %v823 = vadd.f32 %v758, %v822
        %824 = vmatmul.f32.gmra.mxu0 %v536
        %v825 = vpop.f32.mrf.mxu0
        %v826 = vadd.f32 %v761, %v825
        %827 = vmatmul.f32.gmra.mxu0 %v539
        %v828 = vpop.f32.mrf.mxu0
        %v829 = vadd.f32 %v764, %v828
        %830 = vmatmul.f32.gmra.mxu0 %v542
        %v831 = vpop.f32.mrf.mxu0
        %v832 = vadd.f32 %v767, %v831
        %833 = vdwg.mxu0
        %834 = vst [vmem:[%s263] sm:$0xff] %v787
        %835 = vst [vmem:[%s263 + $0x8] sm:$0xff] %v790
        %836 = vst [vmem:[%s263 + $0x10] sm:$0xff] %v793
        %837 = vst [vmem:[%s263 + $0x18] sm:$0xff] %v796
        %838 = vst [vmem:[%s263 + $0x20] sm:$0xff] %v799
        %839 = vst [vmem:[%s263 + $0x28] sm:$0xff] %v802
        %840 = vst [vmem:[%s263 + $0x30] sm:$0xff] %v805
        %841 = vst [vmem:[%s263 + $0x38] sm:$0xff] %v808
        %842 = vst [vmem:[%s263 + $0x40] sm:$0xff] %v811
        %843 = vst [vmem:[%s263 + $0x48] sm:$0xff] %v814
        %844 = vst [vmem:[%s263 + $0x50] sm:$0xff] %v817
        %845 = vst [vmem:[%s263 + $0x58] sm:$0xff] %v820
        %846 = vst [vmem:[%s263 + $0x60] sm:$0xff] %v823
        %847 = vst [vmem:[%s263 + $0x68] sm:$0xff] %v826
        %848 = vst [vmem:[%s263 + $0x70] sm:$0xff] %v829
        %849 = vst [vmem:[%s263 + $0x78] sm:$0xff] %v832
        %s850 = sand.u32 %s140, 1
        %s851 = scalar_lea.sflag [#allocation5], %s850
        %s852 = sand.u32 %s140, 1
        %s853 = smul.addr %s852, 128
        %s854 = scalar_lea.vmem [#allocation8], %s853
        // Predicated region
        $region45: #{tpu_custom_call.1} parent=35 // pred_check
          %p855 = pneg %p150
        $region46: #{tpu_custom_call.1} parent=35 // pred_check_branch
          %857 = sbr.rel (%p855) target = $region48
        $region47: #{tpu_custom_call.1} parent=35 // pred_region
          %859 = vsyncadd %s851, 0
          %s860 = smul.addr %s26, 16
          %s861 = sadd.s32 %s27, %s860
          %s862 = smul.addr %s861, 8
          %s863 = scalar_lea.hbm %s4, %s862
          %s864 = sshll.u32 %s854, 4
          %s865 = int_to_ptr.vmem [resolvable:$true] %s864
          %s866 = sshll.u32 %s863, 4
          %s867 = int_to_ptr.hbm [resolvable:$true] %s866
          %872 = dma.vmem_to_hbm [thread:$0]  %s865, 2048, %s867, %s851, 128, 128, 8
        $region48: #{tpu_custom_call.1} parent=35 // pred_fallthru
          _
      $region36: #{tpu_custom_call.1} parent=5 // pred_fallthru
        _
      %p873 = scmp.le.s32.totalorder 2, %s17
      // Predicated region
      $region49: #{tpu_custom_call.1} parent=5 // pred_check
        %p874 = pneg %p873
      $region50: #{tpu_custom_call.1} parent=5 // pred_check_branch
        %876 = sbr.rel (%p874) target = $region52
      $region51: #{tpu_custom_call.1} parent=5 // pred_region
        %s877 = ssub.s32 %s17, 2
        // Predicated region
        $region53: #{tpu_custom_call.1} parent=51 // pred_check
          %p878 = pneg %p156
        $region54: #{tpu_custom_call.1} parent=51 // pred_check_branch
          %880 = sbr.rel (%p878) target = $region56
        $region55: #{tpu_custom_call.1} parent=51 // pred_region
          %s881 = sand.u32 %s141, 1
          %s882 = scalar_lea.sflag [#allocation5], %s881
          %s883 = sand.u32 %s141, 1
          %s884 = smul.addr %s883, 128
          %s885 = scalar_lea.vmem [#allocation8], %s884
          %887 = dma.done %s882, 2048
        $region56: #{tpu_custom_call.1} parent=51 // pred_fallthru
          _
      $region52: #{tpu_custom_call.1} parent=5 // pred_fallthru
        _
    $region6: #{tpu_custom_call.1} parent=1 // loop_footer
      %s21 = sadd.s32 1, %s17
    $region7: #{tpu_custom_call.1} parent=1 // loop_footer_branch
      %16 = sbr.rel target = $region3
    $region8: #{tpu_custom_call.1} parent=1 // loop_exit
      _
    %888 = vsyncpa [#allocation4], 1
    %s889 = scalar_lea.sflag [#allocation4], 1
    %890 = vsyncpa %s889, 1
    %891 = vsyncpa [#allocation7], 1
    %892 = vsyncpa [#allocation5], 1
    %s893 = scalar_lea.sflag [#allocation5], 1
    %894 = vsyncpa %s893, 1

</llo_original>
